<compile_context>
chip_gen: v7x
topology: tpu7x:2x2x1
jax: 0.10.0
libtpu: 0.0.40
codegen_flags: <defaults>
</compile_context>

<pallas_src>
import functools

import jax
import jax.numpy as jnp
from jax import lax
from jax.experimental import pallas as pl
from jax.experimental.pallas import tpu as pltpu


def convnet_kernel(x_ref, w1_ref, b1_ref, w2_ref, b2_ref, w3_ref, b3_ref,
                   a_ref, o_ref, *, compute_dtype):
    nb, C, L = x_ref.shape

    # padding=1 boundary masks along the lane (L) axis: hoisted, computed once.
    lane = lax.broadcasted_iota(jnp.int32, (C, L), 1)
    is_first = lane == 0
    is_last = lane == L - 1

    # Fused K=3C matmul only when the sublane concat is tile-aligned.
    fused = (C % 8) == 0

    # Load (and optionally fuse) the weights once, reused for every sample.
    layers = []
    for w_ref, b_ref in ((w1_ref, b1_ref), (w2_ref, b2_ref), (w3_ref, b3_ref)):
        if fused:
            # (3, C, C) -> (C, 3C): minor-dim (lane) concat, cheap & supported.
            w = jnp.concatenate([w_ref[0], w_ref[1], w_ref[2]], axis=1)
        else:
            w = w_ref[...]                       # (3, C_out, C_in)
        layers.append((w.astype(compute_dtype), b_ref[...]))

    alpha = a_ref[0]                             # PReLU slope (scalar, SMEM)

    for i in range(nb):                          # small static block-batch unroll
        h = x_ref[i]                             # (C, L) f32
        for w, b in layers:
            h_prev = jnp.where(is_first, 0.0, jnp.roll(h, 1, axis=1))    # x[l-1]
            h_next = jnp.where(is_last, 0.0, jnp.roll(h, -1, axis=1))    # x[l+1]
            if fused:
                x_cat = jnp.concatenate([h_prev, h, h_next], axis=0)     # (3C, L)
                h = jnp.dot(w, x_cat.astype(compute_dtype),
                            preferred_element_type=jnp.float32)
            else:
                h = (jnp.dot(w[0], h_prev.astype(compute_dtype),
                             preferred_element_type=jnp.float32)
                     + jnp.dot(w[1], h.astype(compute_dtype),
                               preferred_element_type=jnp.float32)
                     + jnp.dot(w[2], h_next.astype(compute_dtype),
                               preferred_element_type=jnp.float32))
            h = h + b                            # (C, 1) bias, broadcast over L
        o_ref[i] = jnp.where(h >= 0.0, h, alpha * h).astype(o_ref.dtype)


def _pick_block_batch(N, C, L, target_bytes=512 * 1024, max_unroll=8):
    """Samples per grid step: big enough to amortize per-step overhead, but keep
    >= 2 grid steps (v7x megacore) and a bounded static unroll."""
    per_sample = max(C * L * 4, 1)
    nb = max(1, min(max_unroll, target_bytes // per_sample, N))
    if N >= 2:
        nb = min(nb, N // 2)
    nb = max(nb, 1)
    while N % nb:
        nb -= 1
    return nb


def convnet_forward(x_ncl, params, *, compute_dtype=jnp.float32,
                    block_batch=None):
    """x_ncl: (N, C, L) float32 — same convention as the PyTorch module."""
    w1, b1, w2, b2, w3, b3, alpha = params
    N, C, L = x_ncl.shape
    x_ncl = x_ncl.astype(jnp.float32)

    if compute_dtype != jnp.float32:
        w1 = w1.astype(compute_dtype)
        w2 = w2.astype(compute_dtype)
        w3 = w3.astype(compute_dtype)

    nb = block_batch if block_batch is not None else _pick_block_batch(N, C, L)
    grid = (N // nb,)

    x_spec = pl.BlockSpec((nb, C, L), lambda n: (n, 0, 0))
    w_spec = pl.BlockSpec((3, C, C), lambda n: (0, 0, 0))   # grid-invariant
    b_spec = pl.BlockSpec((C, 1), lambda n: (0, 0))

    kernel = functools.partial(convnet_kernel, compute_dtype=compute_dtype)

    # NOTE: for very long L, tile the sequence axis with a 1-column halo instead
    # of loading the whole (C, L) slab per sample (keeps VMEM pressure flat).
    return pl.pallas_call(
        kernel,
        out_shape=jax.ShapeDtypeStruct((N, C, L), jnp.float32),
        grid=grid,
        in_specs=[
            x_spec,
            w_spec, b_spec,      # conv1
            w_spec, b_spec,      # conv2
            w_spec, b_spec,      # conv3
            pl.BlockSpec(memory_space=pltpu.MemorySpace.SMEM),   # PReLU alpha
        ],
        out_specs=pl.BlockSpec((nb, C, L), lambda n: (n, 0, 0)),
        compiler_params=pltpu.CompilerParams(
            dimension_semantics=("parallel",),
            vmem_limit_bytes=64 * 1024 * 1024,
        ),
    )(x_ncl, w1, b1, w2, b2, w3, b3, alpha)


def make_params(key, channels):
    """Deterministic synthetic init. Kernel weight layout: (tap, C_out, C_in)."""
    keys = jax.random.split(key, 6)
    params = []
    for i in range(3):
        w_oik = jax.random.normal(keys[2 * i], (channels, channels, 3),
                                  dtype=jnp.float32) * 0.1   # (C_out, C_in, 3)
        b = jax.random.normal(keys[2 * i + 1], (channels,),
                              dtype=jnp.float32) * 0.1
        params.append(jnp.transpose(w_oik, (2, 0, 1)))       # (3, C_out, C_in)
        params.append(b.reshape(channels, 1))                 # (C, 1)
    params.append(jnp.full((1,), 0.25, dtype=jnp.float32))    # PReLU default
    return tuple(params)


def reference_forward(x_ncl, params):
    """Pure-JAX reference matching nn.Conv1d + nn.PReLU semantics."""
    w1, b1, w2, b2, w3, b3, alpha = params
    C = x_ncl.shape[1]
    h = x_ncl
    for w_toi, b in ((w1, b1), (w2, b2), (w3, b3)):
        w_oik = jnp.transpose(w_toi, (1, 2, 0))               # (C_out, C_in, 3)
        h = lax.conv_general_dilated(
            h, w_oik, window_strides=(1,), padding=[(1, 1)],
            dimension_numbers=('NCH', 'OIH', 'NCH'),
            precision=lax.Precision.HIGHEST)
        h = h + b.reshape(1, C, 1)
    a = alpha[0]
    return jnp.where(h >= 0, h, a * h)


if __name__ == "__main__":
    # Config 1: tiny module shapes (C=4 -> per-tap fallback matmul path).
    k_x, k_p = jax.random.split(jax.random.PRNGKey(0))
    N, C, L = 2, 4, 16
    x = jax.random.normal(k_x, (N, C, L), dtype=jnp.float32)
    params = make_params(k_p, C)

    out = jax.block_until_ready(convnet_forward(x, params))
    ref = reference_forward(x, params)
    assert out.shape == (N, C, L)
    assert jnp.allclose(out, ref, atol=1e-5, rtol=1e-5), "f32 mismatch (C=4)"

    # Config 2: lane-dense / fused K=3C path (C % 8 == 0, L >= 128).
    k_x2, k_p2 = jax.random.split(jax.random.PRNGKey(1))
    N2, C2, L2 = 4, 32, 128
    x2 = jax.random.normal(k_x2, (N2, C2, L2), dtype=jnp.float32)
    params2 = make_params(k_p2, C2)

    out2 = jax.block_until_ready(convnet_forward(x2, params2))
    ref2 = reference_forward(x2, params2)
    assert jnp.allclose(out2, ref2, atol=1e-4, rtol=1e-4), "f32 mismatch (C=32)"

    # bf16 matmul operands (v6e/v7x MXU path); f32 accumulation & elementwise.
    out2_bf16 = jax.block_until_ready(
        convnet_forward(x2, params2, compute_dtype=jnp.bfloat16))
    assert jnp.allclose(out2_bf16, ref2, atol=5e-2, rtol=5e-2), "bf16 mismatch"

    print("KERNEL_OK")
</pallas_src>

<mosaic_0001>
module attributes {stable_mosaic.version = 11 : i64} {
  func.func @convnet_kernel(%arg0: i32, %arg1: memref<1x4x16xf32, #tpu.memory_space<vmem>>, %arg2: memref<3x4x4xf32, #tpu.memory_space<vmem>>, %arg3: memref<4x1xf32, #tpu.memory_space<vmem>>, %arg4: memref<3x4x4xf32, #tpu.memory_space<vmem>>, %arg5: memref<4x1xf32, #tpu.memory_space<vmem>>, %arg6: memref<3x4x4xf32, #tpu.memory_space<vmem>>, %arg7: memref<4x1xf32, #tpu.memory_space<vmem>>, %arg8: memref<1xf32, #tpu.memory_space<smem>>, %arg9: memref<1x4x16xf32, #tpu.memory_space<vmem>>) attributes {dimension_semantics = [#tpu.dimension_semantics<parallel>], iteration_bounds = array<i64: 2>, scalar_prefetch = 0 : i64, scratch_operands = 0 : i64, tpu.core_type = #tpu.core_type<tc>, window_params = [{transform_indices = @transform_0, window_bounds = array<i64: 1, 4, 16>}, {pipeline_mode = #tpu.pipeline_mode<synchronous>, transform_indices = @transform_1, window_bounds = array<i64: 3, 4, 4>}, {pipeline_mode = #tpu.pipeline_mode<synchronous>, transform_indices = @transform_2, window_bounds = array<i64: 4, 1>}, {pipeline_mode = #tpu.pipeline_mode<synchronous>, transform_indices = @transform_3, window_bounds = array<i64: 3, 4, 4>}, {pipeline_mode = #tpu.pipeline_mode<synchronous>, transform_indices = @transform_4, window_bounds = array<i64: 4, 1>}, {pipeline_mode = #tpu.pipeline_mode<synchronous>, transform_indices = @transform_5, window_bounds = array<i64: 3, 4, 4>}, {pipeline_mode = #tpu.pipeline_mode<synchronous>, transform_indices = @transform_6, window_bounds = array<i64: 4, 1>}, {transform_indices = @transform_7, window_bounds = array<i64: 1>}, {transform_indices = @transform_8, window_bounds = array<i64: 1, 4, 16>}]} {
    %0 = tpu.iota {dimensions = array<i32: 1>} : vector<4x16xi32>
    %c0_i32 = arith.constant 0 : i32
    %1 = vector.broadcast %c0_i32 : i32 to vector<4x16xi32>
    %2 = arith.cmpi eq, %0, %1 : vector<4x16xi32>
    %c15_i32 = arith.constant 15 : i32
    %3 = vector.broadcast %c15_i32 : i32 to vector<4x16xi32>
    %4 = arith.cmpi eq, %0, %3 : vector<4x16xi32>
    %c0 = arith.constant 0 : index
    %c0_0 = arith.constant 0 : index
    %c0_1 = arith.constant 0 : index
    %5 = vector.load %arg2[%c0, %c0_0, %c0_1] : memref<3x4x4xf32, #tpu.memory_space<vmem>>, vector<3x4x4xf32>
    %c0_2 = arith.constant 0 : index
    %c0_3 = arith.constant 0 : index
    %6 = vector.load %arg3[%c0_2, %c0_3] : memref<4x1xf32, #tpu.memory_space<vmem>>, vector<4x1xf32>
    %c0_4 = arith.constant 0 : index
    %c0_5 = arith.constant 0 : index
    %c0_6 = arith.constant 0 : index
    %7 = vector.load %arg4[%c0_4, %c0_5, %c0_6] : memref<3x4x4xf32, #tpu.memory_space<vmem>>, vector<3x4x4xf32>
    %c0_7 = arith.constant 0 : index
    %c0_8 = arith.constant 0 : index
    %8 = vector.load %arg5[%c0_7, %c0_8] : memref<4x1xf32, #tpu.memory_space<vmem>>, vector<4x1xf32>
    %c0_9 = arith.constant 0 : index
    %c0_10 = arith.constant 0 : index
    %c0_11 = arith.constant 0 : index
    %9 = vector.load %arg6[%c0_9, %c0_10, %c0_11] : memref<3x4x4xf32, #tpu.memory_space<vmem>>, vector<3x4x4xf32>
    %c0_12 = arith.constant 0 : index
    %c0_13 = arith.constant 0 : index
    %10 = vector.load %arg7[%c0_12, %c0_13] : memref<4x1xf32, #tpu.memory_space<vmem>>, vector<4x1xf32>
    %c0_14 = arith.constant 0 : index
    %11 = memref.load %arg8[%c0_14] : memref<1xf32, #tpu.memory_space<smem>>
    %c0_15 = arith.constant 0 : index
    %c0_16 = arith.constant 0 : index
    %c0_17 = arith.constant 0 : index
    %12 = vector.load %arg1[%c0_15, %c0_16, %c0_17] : memref<1x4x16xf32, #tpu.memory_space<vmem>>, vector<1x4x16xf32>
    %13 = vector.shape_cast %12 : vector<1x4x16xf32> to vector<4x16xf32>
    %14 = vector.extract_strided_slice %13 {offsets = [0, 15], sizes = [4, 1], strides = [1, 1]} : vector<4x16xf32> to vector<4x1xf32>
    %15 = vector.extract_strided_slice %13 {offsets = [0, 0], sizes = [4, 15], strides = [1, 1]} : vector<4x16xf32> to vector<4x15xf32>
    %16 = tpu.concatenate %14, %15 in 1 : vector<4x1xf32>, vector<4x15xf32> -> vector<4x16xf32>
    %cst = arith.constant 0.000000e+00 : f32
    %17 = vector.broadcast %cst : f32 to vector<4x16xf32>
    %18 = arith.select %2, %17, %16 : vector<4x16xi1>, vector<4x16xf32>
    %19 = vector.extract_strided_slice %13 {offsets = [0, 1], sizes = [4, 15], strides = [1, 1]} : vector<4x16xf32> to vector<4x15xf32>
    %20 = vector.extract_strided_slice %13 {offsets = [0, 0], sizes = [4, 1], strides = [1, 1]} : vector<4x16xf32> to vector<4x1xf32>
    %21 = tpu.concatenate %19, %20 in 1 : vector<4x15xf32>, vector<4x1xf32> -> vector<4x16xf32>
    %cst_18 = arith.constant 0.000000e+00 : f32
    %22 = vector.broadcast %cst_18 : f32 to vector<4x16xf32>
    %23 = arith.select %4, %22, %21 : vector<4x16xi1>, vector<4x16xf32>
    %24 = vector.extract_strided_slice %5 {offsets = [0, 0, 0], sizes = [1, 4, 4], strides = [1, 1, 1]} : vector<3x4x4xf32> to vector<1x4x4xf32>
    %25 = vector.shape_cast %24 : vector<1x4x4xf32> to vector<4x4xf32>
    %cst_19 = arith.constant dense<0.000000e+00> : vector<4x16xf32>
    %26 = tpu.matmul %25, %18, %cst_19 {dimension_numbers = #tpu.dot_dimension_numbers<[1], [0], [0], [1], [0, 0, 1, 1], [], []>} : vector<4x4xf32>, vector<4x16xf32>, vector<4x16xf32> -> vector<4x16xf32>
    %27 = vector.extract_strided_slice %5 {offsets = [1, 0, 0], sizes = [1, 4, 4], strides = [1, 1, 1]} : vector<3x4x4xf32> to vector<1x4x4xf32>
    %28 = vector.shape_cast %27 : vector<1x4x4xf32> to vector<4x4xf32>
    %cst_20 = arith.constant dense<0.000000e+00> : vector<4x16xf32>
    %29 = tpu.matmul %28, %13, %cst_20 {dimension_numbers = #tpu.dot_dimension_numbers<[1], [0], [0], [1], [0, 0, 1, 1], [], []>} : vector<4x4xf32>, vector<4x16xf32>, vector<4x16xf32> -> vector<4x16xf32>
    %30 = arith.addf %26, %29 : vector<4x16xf32>
    %31 = vector.extract_strided_slice %5 {offsets = [2, 0, 0], sizes = [1, 4, 4], strides = [1, 1, 1]} : vector<3x4x4xf32> to vector<1x4x4xf32>
    %32 = vector.shape_cast %31 : vector<1x4x4xf32> to vector<4x4xf32>
    %cst_21 = arith.constant dense<0.000000e+00> : vector<4x16xf32>
    %33 = tpu.matmul %32, %23, %cst_21 {dimension_numbers = #tpu.dot_dimension_numbers<[1], [0], [0], [1], [0, 0, 1, 1], [], []>} : vector<4x4xf32>, vector<4x16xf32>, vector<4x16xf32> -> vector<4x16xf32>
    %34 = arith.addf %30, %33 : vector<4x16xf32>
    %35 = vector.broadcast %6 : vector<4x1xf32> to vector<4x16xf32>
    %36 = arith.addf %34, %35 : vector<4x16xf32>
    %37 = vector.extract_strided_slice %36 {offsets = [0, 15], sizes = [4, 1], strides = [1, 1]} : vector<4x16xf32> to vector<4x1xf32>
    %38 = vector.extract_strided_slice %36 {offsets = [0, 0], sizes = [4, 15], strides = [1, 1]} : vector<4x16xf32> to vector<4x15xf32>
    %39 = tpu.concatenate %37, %38 in 1 : vector<4x1xf32>, vector<4x15xf32> -> vector<4x16xf32>
    %cst_22 = arith.constant 0.000000e+00 : f32
    %40 = vector.broadcast %cst_22 : f32 to vector<4x16xf32>
    %41 = arith.select %2, %40, %39 : vector<4x16xi1>, vector<4x16xf32>
    %42 = vector.extract_strided_slice %36 {offsets = [0, 1], sizes = [4, 15], strides = [1, 1]} : vector<4x16xf32> to vector<4x15xf32>
    %43 = vector.extract_strided_slice %36 {offsets = [0, 0], sizes = [4, 1], strides = [1, 1]} : vector<4x16xf32> to vector<4x1xf32>
    %44 = tpu.concatenate %42, %43 in 1 : vector<4x15xf32>, vector<4x1xf32> -> vector<4x16xf32>
    %cst_23 = arith.constant 0.000000e+00 : f32
    %45 = vector.broadcast %cst_23 : f32 to vector<4x16xf32>
    %46 = arith.select %4, %45, %44 : vector<4x16xi1>, vector<4x16xf32>
    %47 = vector.extract_strided_slice %7 {offsets = [0, 0, 0], sizes = [1, 4, 4], strides = [1, 1, 1]} : vector<3x4x4xf32> to vector<1x4x4xf32>
    %48 = vector.shape_cast %47 : vector<1x4x4xf32> to vector<4x4xf32>
    %cst_24 = arith.constant dense<0.000000e+00> : vector<4x16xf32>
    %49 = tpu.matmul %48, %41, %cst_24 {dimension_numbers = #tpu.dot_dimension_numbers<[1], [0], [0], [1], [0, 0, 1, 1], [], []>} : vector<4x4xf32>, vector<4x16xf32>, vector<4x16xf32> -> vector<4x16xf32>
    %50 = vector.extract_strided_slice %7 {offsets = [1, 0, 0], sizes = [1, 4, 4], strides = [1, 1, 1]} : vector<3x4x4xf32> to vector<1x4x4xf32>
    %51 = vector.shape_cast %50 : vector<1x4x4xf32> to vector<4x4xf32>
    %cst_25 = arith.constant dense<0.000000e+00> : vector<4x16xf32>
    %52 = tpu.matmul %51, %36, %cst_25 {dimension_numbers = #tpu.dot_dimension_numbers<[1], [0], [0], [1], [0, 0, 1, 1], [], []>} : vector<4x4xf32>, vector<4x16xf32>, vector<4x16xf32> -> vector<4x16xf32>
    %53 = arith.addf %49, %52 : vector<4x16xf32>
    %54 = vector.extract_strided_slice %7 {offsets = [2, 0, 0], sizes = [1, 4, 4], strides = [1, 1, 1]} : vector<3x4x4xf32> to vector<1x4x4xf32>
    %55 = vector.shape_cast %54 : vector<1x4x4xf32> to vector<4x4xf32>
    %cst_26 = arith.constant dense<0.000000e+00> : vector<4x16xf32>
    %56 = tpu.matmul %55, %46, %cst_26 {dimension_numbers = #tpu.dot_dimension_numbers<[1], [0], [0], [1], [0, 0, 1, 1], [], []>} : vector<4x4xf32>, vector<4x16xf32>, vector<4x16xf32> -> vector<4x16xf32>
    %57 = arith.addf %53, %56 : vector<4x16xf32>
    %58 = vector.broadcast %8 : vector<4x1xf32> to vector<4x16xf32>
    %59 = arith.addf %57, %58 : vector<4x16xf32>
    %60 = vector.extract_strided_slice %59 {offsets = [0, 15], sizes = [4, 1], strides = [1, 1]} : vector<4x16xf32> to vector<4x1xf32>
    %61 = vector.extract_strided_slice %59 {offsets = [0, 0], sizes = [4, 15], strides = [1, 1]} : vector<4x16xf32> to vector<4x15xf32>
    %62 = tpu.concatenate %60, %61 in 1 : vector<4x1xf32>, vector<4x15xf32> -> vector<4x16xf32>
    %cst_27 = arith.constant 0.000000e+00 : f32
    %63 = vector.broadcast %cst_27 : f32 to vector<4x16xf32>
    %64 = arith.select %2, %63, %62 : vector<4x16xi1>, vector<4x16xf32>
    %65 = vector.extract_strided_slice %59 {offsets = [0, 1], sizes = [4, 15], strides = [1, 1]} : vector<4x16xf32> to vector<4x15xf32>
    %66 = vector.extract_strided_slice %59 {offsets = [0, 0], sizes = [4, 1], strides = [1, 1]} : vector<4x16xf32> to vector<4x1xf32>
    %67 = tpu.concatenate %65, %66 in 1 : vector<4x15xf32>, vector<4x1xf32> -> vector<4x16xf32>
    %cst_28 = arith.constant 0.000000e+00 : f32
    %68 = vector.broadcast %cst_28 : f32 to vector<4x16xf32>
    %69 = arith.select %4, %68, %67 : vector<4x16xi1>, vector<4x16xf32>
    %70 = vector.extract_strided_slice %9 {offsets = [0, 0, 0], sizes = [1, 4, 4], strides = [1, 1, 1]} : vector<3x4x4xf32> to vector<1x4x4xf32>
    %71 = vector.shape_cast %70 : vector<1x4x4xf32> to vector<4x4xf32>
    %cst_29 = arith.constant dense<0.000000e+00> : vector<4x16xf32>
    %72 = tpu.matmul %71, %64, %cst_29 {dimension_numbers = #tpu.dot_dimension_numbers<[1], [0], [0], [1], [0, 0, 1, 1], [], []>} : vector<4x4xf32>, vector<4x16xf32>, vector<4x16xf32> -> vector<4x16xf32>
    %73 = vector.extract_strided_slice %9 {offsets = [1, 0, 0], sizes = [1, 4, 4], strides = [1, 1, 1]} : vector<3x4x4xf32> to vector<1x4x4xf32>
    %74 = vector.shape_cast %73 : vector<1x4x4xf32> to vector<4x4xf32>
    %cst_30 = arith.constant dense<0.000000e+00> : vector<4x16xf32>
    %75 = tpu.matmul %74, %59, %cst_30 {dimension_numbers = #tpu.dot_dimension_numbers<[1], [0], [0], [1], [0, 0, 1, 1], [], []>} : vector<4x4xf32>, vector<4x16xf32>, vector<4x16xf32> -> vector<4x16xf32>
    %76 = arith.addf %72, %75 : vector<4x16xf32>
    %77 = vector.extract_strided_slice %9 {offsets = [2, 0, 0], sizes = [1, 4, 4], strides = [1, 1, 1]} : vector<3x4x4xf32> to vector<1x4x4xf32>
    %78 = vector.shape_cast %77 : vector<1x4x4xf32> to vector<4x4xf32>
    %cst_31 = arith.constant dense<0.000000e+00> : vector<4x16xf32>
    %79 = tpu.matmul %78, %69, %cst_31 {dimension_numbers = #tpu.dot_dimension_numbers<[1], [0], [0], [1], [0, 0, 1, 1], [], []>} : vector<4x4xf32>, vector<4x16xf32>, vector<4x16xf32> -> vector<4x16xf32>
    %80 = arith.addf %76, %79 : vector<4x16xf32>
    %81 = vector.broadcast %10 : vector<4x1xf32> to vector<4x16xf32>
    %82 = arith.addf %80, %81 : vector<4x16xf32>
    %cst_32 = arith.constant 0.000000e+00 : f32
    %83 = vector.broadcast %cst_32 : f32 to vector<4x16xf32>
    %84 = arith.cmpf oge, %82, %83 : vector<4x16xf32>
    %85 = vector.broadcast %11 : f32 to vector<4x16xf32>
    %86 = arith.mulf %85, %82 : vector<4x16xf32>
    %87 = arith.select %84, %82, %86 : vector<4x16xi1>, vector<4x16xf32>
    %c0_33 = arith.constant 0 : index
    %c0_34 = arith.constant 0 : index
    %c0_35 = arith.constant 0 : index
    %88 = vector.load %arg9[%c0_33, %c0_34, %c0_35] : memref<1x4x16xf32, #tpu.memory_space<vmem>>, vector<1x4x16xf32>
    %89 = vector.shape_cast %88 : vector<1x4x16xf32> to vector<4x16xf32>
    %90 = vector.shape_cast %87 : vector<4x16xf32> to vector<1x4x16xf32>
    tpu.vector_store %arg9[%c0_33, %c0_34, %c0_35], %90 {strides = array<i32>} : memref<1x4x16xf32, #tpu.memory_space<vmem>>, vector<1x4x16xf32>,
    return
  }
  func.func @transform_0(%arg0: i32) -> (i32, i32, i32) {
    %c0_i32 = arith.constant 0 : i32
    %c0_i32_0 = arith.constant 0 : i32
    %c0_i32_1 = arith.constant 0 : i32
    return %arg0, %c0_i32, %c0_i32_0 : i32, i32, i32
  }
  func.func @transform_1(%arg0: i32) -> (i32, i32, i32) {
    %c0_i32 = arith.constant 0 : i32
    %c0_i32_0 = arith.constant 0 : i32
    %c0_i32_1 = arith.constant 0 : i32
    %c0_i32_2 = arith.constant 0 : i32
    return %c0_i32, %c0_i32_0, %c0_i32_1 : i32, i32, i32
  }
  func.func @transform_2(%arg0: i32) -> (i32, i32) {
    %c0_i32 = arith.constant 0 : i32
    %c0_i32_0 = arith.constant 0 : i32
    %c0_i32_1 = arith.constant 0 : i32
    return %c0_i32, %c0_i32_0 : i32, i32
  }
  func.func @transform_3(%arg0: i32) -> (i32, i32, i32) {
    %c0_i32 = arith.constant 0 : i32
    %c0_i32_0 = arith.constant 0 : i32
    %c0_i32_1 = arith.constant 0 : i32
    %c0_i32_2 = arith.constant 0 : i32
    return %c0_i32, %c0_i32_0, %c0_i32_1 : i32, i32, i32
  }
  func.func @transform_4(%arg0: i32) -> (i32, i32) {
    %c0_i32 = arith.constant 0 : i32
    %c0_i32_0 = arith.constant 0 : i32
    %c0_i32_1 = arith.constant 0 : i32
    return %c0_i32, %c0_i32_0 : i32, i32
  }
  func.func @transform_5(%arg0: i32) -> (i32, i32, i32) {
    %c0_i32 = arith.constant 0 : i32
    %c0_i32_0 = arith.constant 0 : i32
    %c0_i32_1 = arith.constant 0 : i32
    %c0_i32_2 = arith.constant 0 : i32
    return %c0_i32, %c0_i32_0, %c0_i32_1 : i32, i32, i32
  }
  func.func @transform_6(%arg0: i32) -> (i32, i32) {
    %c0_i32 = arith.constant 0 : i32
    %c0_i32_0 = arith.constant 0 : i32
    %c0_i32_1 = arith.constant 0 : i32
    return %c0_i32, %c0_i32_0 : i32, i32
  }
  func.func @transform_7(%arg0: i32) -> i32 {
    %c0_i32 = arith.constant 0 : i32
    %c0_i32_0 = arith.constant 0 : i32
    return %c0_i32 : i32
  }
  func.func @transform_8(%arg0: i32) -> (i32, i32, i32) {
    %c0_i32 = arith.constant 0 : i32
    %c0_i32_0 = arith.constant 0 : i32
    %c0_i32_1 = arith.constant 0 : i32
    return %arg0, %c0_i32, %c0_i32_0 : i32, i32, i32
  }
}

</mosaic_0001>

<llo_original>
// kernel: tpu_custom_call.1
$region0: #{tpu_custom_call.1}
  #allocation0 [shape = 'u32[]', space=smem, size = 0x4, offset = 0x4, fixed_abs, tag = 'smem constant byte address 0x4 - core index']
  #allocation1 [shape = 'u32[144,128]{1,0:T(1,128)}', space=vmem, size = 0x12000, scoped, tag = 'internal scratch']
  #allocation2 [shape = 'f32[1]{0:T(128)S(6)}', space=smem, size = 0x200, scoped, tag = 'scoped memory for tpu_custom_call.1']
  %s0 = inlined_call_operand.hbm [shape: f32[2,4,16], index: 0, kind: input, shape index: {}]
  %s1 = inlined_call_operand.hbm [shape: f32[3,4,4], index: 1, kind: input, shape index: {}]
  %s2 = inlined_call_operand.hbm [shape: f32[4,1], index: 2, kind: input, shape index: {}]
  %s3 = inlined_call_operand.hbm [shape: f32[3,4,4], index: 3, kind: input, shape index: {}]
  %s4 = inlined_call_operand.hbm [shape: f32[4,1], index: 4, kind: input, shape index: {}]
  %s5 = inlined_call_operand.hbm [shape: f32[3,4,4], index: 5, kind: input, shape index: {}]
  %s6 = inlined_call_operand.hbm [shape: f32[4,1], index: 6, kind: input, shape index: {}]
  %s7 = inlined_call_operand.<no memory space> [shape: f32[1], index: 7, kind: input, shape index: {}]
  %s8 = inlined_call_operand.hbm [shape: f32[2,4,16], index: 8, kind: output, shape index: {}]
  %s9 = sld [smem:[#allocation0]]
  $region93: #{tpu_custom_call.1} parent=0
    _
  %s11 = ssub.s32 1, %s9
  %s12 = scalar_select 0, %s11, %s9
  %13 = sst [smem:[#allocation2]] %s7
  $region1: #{tpu_custom_call.1} parent=0
    #allocation3 [shape = 'u8[4096]{0}', space=vmem, size = 0x1000, scoped, tag = 'input window, operand 0']
    #allocation4 [shape = 's32[2]{0}', space=sflag, size = 0x8, scoped, tag = 'scoped memory for tpu_custom_call.1']
    #allocation5 [shape = 's32[2]{0}', space=sflag, size = 0x8, scoped, tag = 'scoped memory for tpu_custom_call.1']
    #allocation6 [shape = 'u8[6144]{0}', space=vmem, size = 0x1800, scoped, tag = 'input window, operand 1, single buffered']
    #allocation7 [shape = 's32[1]{0}', space=sflag, size = 0x4, scoped, tag = 'scoped memory for tpu_custom_call.1']
    #allocation8 [shape = 'u8[2048]{0}', space=vmem, size = 0x800, scoped, tag = 'input window, operand 2, single buffered']
    #allocation9 [shape = 'u8[6144]{0}', space=vmem, size = 0x1800, scoped, tag = 'input window, operand 3, single buffered']
    #allocation10 [shape = 's32[1]{0}', space=sflag, size = 0x4, scoped, tag = 'scoped memory for tpu_custom_call.1']
    #allocation11 [shape = 'u8[2048]{0}', space=vmem, size = 0x800, scoped, tag = 'input window, operand 4, single buffered']
    #allocation12 [shape = 'u8[6144]{0}', space=vmem, size = 0x1800, scoped, tag = 'input window, operand 5, single buffered']
    #allocation13 [shape = 's32[1]{0}', space=sflag, size = 0x4, scoped, tag = 'scoped memory for tpu_custom_call.1']
    #allocation14 [shape = 'u8[2048]{0}', space=vmem, size = 0x800, scoped, tag = 'input window, operand 6, single buffered']
    #allocation15 [shape = 'u8[4096]{0}', space=vmem, size = 0x1000, scoped, tag = 'output window, operand 0']
    %14 = vsyncpa [#allocation4], 0
    %s15 = scalar_lea.sflag [#allocation4], 1
    %16 = vsyncpa %s15, 0
    %17 = vsyncpa [#allocation7], 0
    %18 = vsyncpa [#allocation10], 0
    %19 = vsyncpa [#allocation13], 0
    %20 = vsyncpa [#allocation5], 0
    %s21 = scalar_lea.sflag [#allocation5], 1
    %22 = vsyncpa %s21, 0
    loop: start=0, step=1, limit=4
    $region2: #{tpu_custom_call.1} parent=1 // loop_pre_header
      _
    $region3: #{tpu_custom_call.1} parent=1 // loop_header
      %s24 = sphi 0, %s28
      %p25 = scmp.ge.s32.totalorder %s24, 4
      %s34 = sphi 0, %s36
      %s37 = sphi 0, %s34
      %s38 = sphi 0, %s37
      %s54 = sphi 0, %s38
      %s58 = sphi 0, %s58
      %s60 = sphi 0, %s58
      %s61 = sphi 0, %s60
      %s75 = sphi 0, %s61
      %s79 = sphi 0, %s79
      %s81 = sphi 0, %s79
      %s82 = sphi 0, %s81
      %s96 = sphi 0, %s82
      %s100 = sphi 0, %s100
      %s102 = sphi 0, %s100
      %s103 = sphi 0, %s102
      %s117 = sphi 0, %s103
      %s121 = sphi 0, %s121
      %s123 = sphi 0, %s121
      %s124 = sphi 0, %s123
      %s138 = sphi 0, %s124
      %s142 = sphi 0, %s142
      %s144 = sphi 0, %s142
      %s145 = sphi 0, %s144
      %s159 = sphi 0, %s145
      %s163 = sphi 0, %s163
      %s165 = sphi 0, %s163
      %s166 = sphi 0, %s165
      %s180 = sphi 0, %s166
      %s184 = sphi 0, %s184
      %s186 = sphi 0, %s184
      %s187 = sphi 0, %s186
      %s201 = sphi 0, %s187
      %s207 = sphi 0, %s209
      %s210 = sphi 0, %s207
      %s211 = sphi 0, %s210
      %s227 = sphi 0, %s211
    $region4: #{tpu_custom_call.1} parent=1 // loop_header_branch
      %27 = sbr.rel (%p25) target = $region8
    $region5: #{tpu_custom_call.1} parent=1 // loop_body
      %s29 = ssub.s32 %s24, 1
      %s30 = ssub.s32 %s24, 2
      %s31 = sadd.s32 %s24, 1
      %s32 = ssub.s32 %s24, %s31
      %p33 = scmp.eq.s32.totalorder %s32, 0
      %s35 = sadd.s32 %s34, 1
      %s36 = scalar_select %p33, %s34, %s35
      %p39 = pneg %p33
      %p40 = scmp.eq.s32.totalorder %s24, 1
      %p41 = por %p39, %p40
      %p42 = scmp.ne.s32.totalorder %s34, %s37
      %p43 = scmp.eq.s32.totalorder %s24, 0
      %p44 = por %p42, %p43
      %p45 = scmp.ne.s32.totalorder %s34, %s37
      %p46 = scmp.eq.s32.totalorder %s29, 1
      %p47 = por %p45, %p46
      %p48 = scmp.ne.s32.totalorder %s37, %s38
      %p49 = scmp.eq.s32.totalorder %s29, 0
      %p50 = por %p48, %p49
      %p51 = scmp.ne.s32.totalorder %s37, %s38
      %p52 = scmp.eq.s32.totalorder %s30, 1
      %p53 = por %p51, %p52
      %p55 = scmp.ne.s32.totalorder %s38, %s54
      %p56 = scmp.eq.s32.totalorder %s30, 0
      %p57 = por %p55, %p56
      %s59 = sadd.s32 %s58, 1
      %p62 = scmp.eq.s32.totalorder %s24, 1
      %p63 = scmp.ne.s32.totalorder %s58, %s60
      %p64 = scmp.eq.s32.totalorder %s24, 0
      %p65 = por %p63, %p64
      %p66 = scmp.ne.s32.totalorder %s58, %s60
      %p67 = scmp.eq.s32.totalorder %s29, 1
      %p68 = por %p66, %p67
      %p69 = scmp.ne.s32.totalorder %s60, %s61
      %p70 = scmp.eq.s32.totalorder %s29, 0
      %p71 = por %p69, %p70
      %p72 = scmp.ne.s32.totalorder %s60, %s61
      %p73 = scmp.eq.s32.totalorder %s30, 1
      %p74 = por %p72, %p73
      %p76 = scmp.ne.s32.totalorder %s61, %s75
      %p77 = scmp.eq.s32.totalorder %s30, 0
      %p78 = por %p76, %p77
      %s80 = sadd.s32 %s79, 1
      %p83 = scmp.eq.s32.totalorder %s24, 1
      %p84 = scmp.ne.s32.totalorder %s79, %s81
      %p85 = scmp.eq.s32.totalorder %s24, 0
      %p86 = por %p84, %p85
      %p87 = scmp.ne.s32.totalorder %s79, %s81
      %p88 = scmp.eq.s32.totalorder %s29, 1
      %p89 = por %p87, %p88
      %p90 = scmp.ne.s32.totalorder %s81, %s82
      %p91 = scmp.eq.s32.totalorder %s29, 0
      %p92 = por %p90, %p91
      %p93 = scmp.ne.s32.totalorder %s81, %s82
      %p94 = scmp.eq.s32.totalorder %s30, 1
      %p95 = por %p93, %p94
      %p97 = scmp.ne.s32.totalorder %s82, %s96
      %p98 = scmp.eq.s32.totalorder %s30, 0
      %p99 = por %p97, %p98
      %s101 = sadd.s32 %s100, 1
      %p104 = scmp.eq.s32.totalorder %s24, 1
      %p105 = scmp.ne.s32.totalorder %s100, %s102
      %p106 = scmp.eq.s32.totalorder %s24, 0
      %p107 = por %p105, %p106
      %p108 = scmp.ne.s32.totalorder %s100, %s102
      %p109 = scmp.eq.s32.totalorder %s29, 1
      %p110 = por %p108, %p109
      %p111 = scmp.ne.s32.totalorder %s102, %s103
      %p112 = scmp.eq.s32.totalorder %s29, 0
      %p113 = por %p111, %p112
      %p114 = scmp.ne.s32.totalorder %s102, %s103
      %p115 = scmp.eq.s32.totalorder %s30, 1
      %p116 = por %p114, %p115
      %p118 = scmp.ne.s32.totalorder %s103, %s117
      %p119 = scmp.eq.s32.totalorder %s30, 0
      %p120 = por %p118, %p119
      %s122 = sadd.s32 %s121, 1
      %p125 = scmp.eq.s32.totalorder %s24, 1
      %p126 = scmp.ne.s32.totalorder %s121, %s123
      %p127 = scmp.eq.s32.totalorder %s24, 0
      %p128 = por %p126, %p127
      %p129 = scmp.ne.s32.totalorder %s121, %s123
      %p130 = scmp.eq.s32.totalorder %s29, 1
      %p131 = por %p129, %p130
      %p132 = scmp.ne.s32.totalorder %s123, %s124
      %p133 = scmp.eq.s32.totalorder %s29, 0
      %p134 = por %p132, %p133
      %p135 = scmp.ne.s32.totalorder %s123, %s124
      %p136 = scmp.eq.s32.totalorder %s30, 1
      %p137 = por %p135, %p136
      %p139 = scmp.ne.s32.totalorder %s124, %s138
      %p140 = scmp.eq.s32.totalorder %s30, 0
      %p141 = por %p139, %p140
      %s143 = sadd.s32 %s142, 1
      %p146 = scmp.eq.s32.totalorder %s24, 1
      %p147 = scmp.ne.s32.totalorder %s142, %s144
      %p148 = scmp.eq.s32.totalorder %s24, 0
      %p149 = por %p147, %p148
      %p150 = scmp.ne.s32.totalorder %s142, %s144
      %p151 = scmp.eq.s32.totalorder %s29, 1
      %p152 = por %p150, %p151
      %p153 = scmp.ne.s32.totalorder %s144, %s145
      %p154 = scmp.eq.s32.totalorder %s29, 0
      %p155 = por %p153, %p154
      %p156 = scmp.ne.s32.totalorder %s144, %s145
      %p157 = scmp.eq.s32.totalorder %s30, 1
      %p158 = por %p156, %p157
      %p160 = scmp.ne.s32.totalorder %s145, %s159
      %p161 = scmp.eq.s32.totalorder %s30, 0
      %p162 = por %p160, %p161
      %s164 = sadd.s32 %s163, 1
      %p167 = scmp.eq.s32.totalorder %s24, 1
      %p168 = scmp.ne.s32.totalorder %s163, %s165
      %p169 = scmp.eq.s32.totalorder %s24, 0
      %p170 = por %p168, %p169
      %p171 = scmp.ne.s32.totalorder %s163, %s165
      %p172 = scmp.eq.s32.totalorder %s29, 1
      %p173 = por %p171, %p172
      %p174 = scmp.ne.s32.totalorder %s165, %s166
      %p175 = scmp.eq.s32.totalorder %s29, 0
      %p176 = por %p174, %p175
      %p177 = scmp.ne.s32.totalorder %s165, %s166
      %p178 = scmp.eq.s32.totalorder %s30, 1
      %p179 = por %p177, %p178
      %p181 = scmp.ne.s32.totalorder %s166, %s180
      %p182 = scmp.eq.s32.totalorder %s30, 0
      %p183 = por %p181, %p182
      %s185 = sadd.s32 %s184, 1
      %p188 = scmp.eq.s32.totalorder %s24, 1
      %p189 = scmp.ne.s32.totalorder %s184, %s186
      %p190 = scmp.eq.s32.totalorder %s24, 0
      %p191 = por %p189, %p190
      %p192 = scmp.ne.s32.totalorder %s184, %s186
      %p193 = scmp.eq.s32.totalorder %s29, 1
      %p194 = por %p192, %p193
      %p195 = scmp.ne.s32.totalorder %s186, %s187
      %p196 = scmp.eq.s32.totalorder %s29, 0
      %p197 = por %p195, %p196
      %p198 = scmp.ne.s32.totalorder %s186, %s187
      %p199 = scmp.eq.s32.totalorder %s30, 1
      %p200 = por %p198, %p199
      %p202 = scmp.ne.s32.totalorder %s187, %s201
      %p203 = scmp.eq.s32.totalorder %s30, 0
      %p204 = por %p202, %p203
      %s205 = ssub.s32 %s24, %s31
      %p206 = scmp.eq.s32.totalorder %s205, 0
      %s208 = sadd.s32 %s207, 1
      %s209 = scalar_select %p206, %s207, %s208
      %p212 = pneg %p206
      %p213 = scmp.eq.s32.totalorder %s24, 1
      %p214 = por %p212, %p213
      %p215 = scmp.ne.s32.totalorder %s207, %s210
      %p216 = scmp.eq.s32.totalorder %s24, 0
      %p217 = por %p215, %p216
      %p218 = scmp.ne.s32.totalorder %s207, %s210
      %p219 = scmp.eq.s32.totalorder %s29, 1
      %p220 = por %p218, %p219
      %p221 = scmp.ne.s32.totalorder %s210, %s211
      %p222 = scmp.eq.s32.totalorder %s29, 0
      %p223 = por %p221, %p222
      %p224 = scmp.ne.s32.totalorder %s210, %s211
      %p225 = scmp.eq.s32.totalorder %s30, 1
      %p226 = por %p224, %p225
      %p228 = scmp.ne.s32.totalorder %s211, %s227
      %p229 = scmp.eq.s32.totalorder %s30, 0
      %p230 = por %p228, %p229
      %p231 = scmp.le.s32.totalorder 1, %s24
      %p232 = scmp.lt.s32.totalorder %s24, 3
      %p233 = pnand %p231, %p232
      %p234 = pneg %p233
      // Predicated region
      $region9: #{tpu_custom_call.1} parent=5 // pred_check
        _
      $region10: #{tpu_custom_call.1} parent=5 // pred_check_branch
        %236 = sbr.rel (%p233) target = $region12
      $region11: #{tpu_custom_call.1} parent=5 // pred_region
        %s237 = ssub.s32 %s24, 1
        // Predicated region
        $region13: #{tpu_custom_call.1} parent=11 // pred_check
          %p238 = pneg %p71
        $region14: #{tpu_custom_call.1} parent=11 // pred_check_branch
          %240 = sbr.rel (%p238) target = $region16
        $region15: #{tpu_custom_call.1} parent=11 // pred_region
          %s242 = ssub.s32 192, 192
          %243 = vsyncadd [#allocation7], %s242
          %s244 = sshll.u32 [#allocation6], 4
          %s245 = int_to_ptr.vmem [resolvable:$true] %s244
          %250 = dma.hbm_to_vmem [thread:$0]  %s1, 192, %s245, [#allocation7], 64, 64, 4
        $region16: #{tpu_custom_call.1} parent=11 // pred_fallthru
          _
        // Predicated region
        $region17: #{tpu_custom_call.1} parent=11 // pred_check
          %p251 = pneg %p92
        $region18: #{tpu_custom_call.1} parent=11 // pred_check_branch
          %253 = sbr.rel (%p251) target = $region20
        $region19: #{tpu_custom_call.1} parent=11 // pred_region
          %s255 = ssub.s32 64, 64
          %256 = vsyncadd [#allocation7], %s255
          %s258 = sshll.u32 [#allocation8], 4
          %s259 = int_to_ptr.vmem [resolvable:$true] %s258
          %261 = dma.hbm_to_vmem [thread:$0]  %s2, 64, %s259, [#allocation7]
        $region20: #{tpu_custom_call.1} parent=11 // pred_fallthru
          _
        // Predicated region
        $region21: #{tpu_custom_call.1} parent=11 // pred_check
          %p262 = pneg %p113
        $region22: #{tpu_custom_call.1} parent=11 // pred_check_branch
          %264 = sbr.rel (%p262) target = $region24
        $region23: #{tpu_custom_call.1} parent=11 // pred_region
          %s266 = ssub.s32 192, 192
          %267 = vsyncadd [#allocation10], %s266
          %s268 = sshll.u32 [#allocation9], 4
          %s269 = int_to_ptr.vmem [resolvable:$true] %s268
          %274 = dma.hbm_to_vmem [thread:$0]  %s3, 192, %s269, [#allocation10], 64, 64, 4
        $region24: #{tpu_custom_call.1} parent=11 // pred_fallthru
          _
        // Predicated region
        $region25: #{tpu_custom_call.1} parent=11 // pred_check
          %p275 = pneg %p134
        $region26: #{tpu_custom_call.1} parent=11 // pred_check_branch
          %277 = sbr.rel (%p275) target = $region28
        $region27: #{tpu_custom_call.1} parent=11 // pred_region
          %s279 = ssub.s32 64, 64
          %280 = vsyncadd [#allocation10], %s279
          %s282 = sshll.u32 [#allocation11], 4
          %s283 = int_to_ptr.vmem [resolvable:$true] %s282
          %285 = dma.hbm_to_vmem [thread:$0]  %s4, 64, %s283, [#allocation10]
        $region28: #{tpu_custom_call.1} parent=11 // pred_fallthru
          _
        // Predicated region
        $region29: #{tpu_custom_call.1} parent=11 // pred_check
          %p286 = pneg %p155
        $region30: #{tpu_custom_call.1} parent=11 // pred_check_branch
          %288 = sbr.rel (%p286) target = $region32
        $region31: #{tpu_custom_call.1} parent=11 // pred_region
          %s290 = ssub.s32 192, 192
          %291 = vsyncadd [#allocation13], %s290
          %s292 = sshll.u32 [#allocation12], 4
          %s293 = int_to_ptr.vmem [resolvable:$true] %s292
          %298 = dma.hbm_to_vmem [thread:$0]  %s5, 192, %s293, [#allocation13], 64, 64, 4
        $region32: #{tpu_custom_call.1} parent=11 // pred_fallthru
          _
        // Predicated region
        $region33: #{tpu_custom_call.1} parent=11 // pred_check
          %p299 = pneg %p176
        $region34: #{tpu_custom_call.1} parent=11 // pred_check_branch
          %301 = sbr.rel (%p299) target = $region36
        $region35: #{tpu_custom_call.1} parent=11 // pred_region
          %s303 = ssub.s32 64, 64
          %304 = vsyncadd [#allocation13], %s303
          %s306 = sshll.u32 [#allocation14], 4
          %s307 = int_to_ptr.vmem [resolvable:$true] %s306
          %309 = dma.hbm_to_vmem [thread:$0]  %s6, 64, %s307, [#allocation13]
        $region36: #{tpu_custom_call.1} parent=11 // pred_fallthru
          _
        // Predicated region
        $region37: #{tpu_custom_call.1} parent=11 // pred_check
          %p310 = pneg %p197
        $region38: #{tpu_custom_call.1} parent=11 // pred_check_branch
          %312 = sbr.rel (%p310) target = $region40
        $region39: #{tpu_custom_call.1} parent=11 // pred_region
          _
        $region40: #{tpu_custom_call.1} parent=11 // pred_fallthru
          _
      $region12: #{tpu_custom_call.1} parent=5 // pred_fallthru
        _
      %p313 = scmp.lt.s32.totalorder %s24, 2
      // Predicated region
      $region41: #{tpu_custom_call.1} parent=5 // pred_check
        %p314 = pneg %p313
      $region42: #{tpu_custom_call.1} parent=5 // pred_check_branch
        %316 = sbr.rel (%p314) target = $region44
      $region43: #{tpu_custom_call.1} parent=5 // pred_region
        // Predicated region
        $region45: #{tpu_custom_call.1} parent=43 // pred_check
          %p317 = pneg %p44
        $region46: #{tpu_custom_call.1} parent=43 // pred_check_branch
          %319 = sbr.rel (%p317) target = $region48
        $region47: #{tpu_custom_call.1} parent=43 // pred_region
          %s320 = sand.u32 %s34, 1
          %s321 = scalar_lea.sflag [#allocation4], %s320
          %s322 = sand.u32 %s34, 1
          %s323 = smul.addr %s322, 4
          %s324 = scalar_lea.vmem [#allocation3], %s323
          %s326 = ssub.s32 64, 64
          %327 = vsyncadd %s321, %s326
          %s328 = smul.addr %s24, 64
          %s329 = scalar_lea.hbm %s0, %s328
          %s331 = sshll.u32 %s324, 4
          %s332 = int_to_ptr.vmem [resolvable:$true] %s331
          %334 = dma.hbm_to_vmem [thread:$0]  %s329, 64, %s332, %s321
        $region48: #{tpu_custom_call.1} parent=43 // pred_fallthru
          _
      $region44: #{tpu_custom_call.1} parent=5 // pred_fallthru
        _
      %p335 = scmp.le.s32.totalorder 1, %s24
      %p336 = scmp.lt.s32.totalorder %s24, 3
      %p337 = pnand %p335, %p336
      %p338 = pneg %p337
      // Predicated region
      $region49: #{tpu_custom_call.1} parent=5 // pred_check
        _
      $region50: #{tpu_custom_call.1} parent=5 // pred_check_branch
        %340 = sbr.rel (%p337) target = $region52
      $region51: #{tpu_custom_call.1} parent=5 // pred_region
        %s341 = ssub.s32 %s24, 1
        %s342 = sand.u32 %s37, 1
        %s343 = scalar_lea.sflag [#allocation4], %s342
        %s344 = sand.u32 %s37, 1
        %s345 = smul.addr %s344, 4
        %s346 = scalar_lea.vmem [#allocation3], %s345
        // Predicated region
        $region53: #{tpu_custom_call.1} parent=51 // pred_check
          %p347 = pneg %p50
        $region54: #{tpu_custom_call.1} parent=51 // pred_check_branch
          %349 = sbr.rel (%p347) target = $region56
        $region55: #{tpu_custom_call.1} parent=51 // pred_region
          %350 = dma.done %s343, 64
        $region56: #{tpu_custom_call.1} parent=51 // pred_fallthru
          _
        // Predicated region
        $region57: #{tpu_custom_call.1} parent=51 // pred_check
          %p351 = pneg %p71
        $region58: #{tpu_custom_call.1} parent=51 // pred_check_branch
          %353 = sbr.rel (%p351) target = $region60
        $region59: #{tpu_custom_call.1} parent=51 // pred_region
          %354 = dma.done [#allocation7], 192
        $region60: #{tpu_custom_call.1} parent=51 // pred_fallthru
          _
        // Predicated region
        $region61: #{tpu_custom_call.1} parent=51 // pred_check
          %p355 = pneg %p92
        $region62: #{tpu_custom_call.1} parent=51 // pred_check_branch
          %357 = sbr.rel (%p355) target = $region64
        $region63: #{tpu_custom_call.1} parent=51 // pred_region
          %358 = dma.done [#allocation7], 64
        $region64: #{tpu_custom_call.1} parent=51 // pred_fallthru
          _
        // Predicated region
        $region65: #{tpu_custom_call.1} parent=51 // pred_check
          %p359 = pneg %p113
        $region66: #{tpu_custom_call.1} parent=51 // pred_check_branch
          %361 = sbr.rel (%p359) target = $region68
        $region67: #{tpu_custom_call.1} parent=51 // pred_region
          %362 = dma.done [#allocation10], 192
        $region68: #{tpu_custom_call.1} parent=51 // pred_fallthru
          _
        // Predicated region
        $region69: #{tpu_custom_call.1} parent=51 // pred_check
          %p363 = pneg %p134
        $region70: #{tpu_custom_call.1} parent=51 // pred_check_branch
          %365 = sbr.rel (%p363) target = $region72
        $region71: #{tpu_custom_call.1} parent=51 // pred_region
          %366 = dma.done [#allocation10], 64
        $region72: #{tpu_custom_call.1} parent=51 // pred_fallthru
          _
        // Predicated region
        $region73: #{tpu_custom_call.1} parent=51 // pred_check
          %p367 = pneg %p155
        $region74: #{tpu_custom_call.1} parent=51 // pred_check_branch
          %369 = sbr.rel (%p367) target = $region76
        $region75: #{tpu_custom_call.1} parent=51 // pred_region
          %370 = dma.done [#allocation13], 192
        $region76: #{tpu_custom_call.1} parent=51 // pred_fallthru
          _
        // Predicated region
        $region77: #{tpu_custom_call.1} parent=51 // pred_check
          %p371 = pneg %p176
        $region78: #{tpu_custom_call.1} parent=51 // pred_check_branch
          %373 = sbr.rel (%p371) target = $region80
        $region79: #{tpu_custom_call.1} parent=51 // pred_region
          %374 = dma.done [#allocation13], 64
        $region80: #{tpu_custom_call.1} parent=51 // pred_fallthru
          _
        %s375 = sand.u32 %s37, 1
        %s376 = scalar_lea.sflag [#allocation4], %s375
        %s377 = sand.u32 %s37, 1
        %s378 = smul.addr %s377, 4
        %s379 = scalar_lea.vmem [#allocation3], %s378
        %p380 = pneg %p50
        %p381 = pneg %p47
        %p382 = pneg %p71
        %p383 = pneg %p68
        %p384 = pneg %p92
        %p385 = pneg %p89
        %p386 = pneg %p113
        %p387 = pneg %p110
        %p388 = pneg %p134
        %p389 = pneg %p131
        %p390 = pneg %p155
        %p391 = pneg %p152
        %p392 = pneg %p176
        %p393 = pneg %p173
        %p394 = pneg %p197
        %p395 = pneg %p194
        %p396 = pneg %p223
        %p397 = pneg %p220
        %s398 = sand.u32 %s210, 1
        %s399 = scalar_lea.sflag [#allocation5], %s398
        %s400 = sand.u32 %s210, 1
        %s401 = smul.addr %s400, 4
        %s402 = scalar_lea.vmem [#allocation15], %s401
        %v403 = vlaneseq
        %v404 = vand.u32 %v403, 127
        %vm405 = vcmp.eq.s32.totalorder %v404, 0
        %vm406 = vcmp.eq.s32.totalorder %v404, 15
        %v407 = vld [vmem:[#allocation6] sm:$0xf]
        %v408 = vld [vmem:[#allocation6 + $0x4] sm:$0xf]
        %v409 = vld [vmem:[#allocation6 + $0x8] sm:$0xf]
        %v410 = vld [vmem:[#allocation8] sm:$0xf]
        %v411 = vld [vmem:[#allocation9] sm:$0xf]
        %v412 = vld [vmem:[#allocation9 + $0x4] sm:$0xf]
        %v413 = vld [vmem:[#allocation9 + $0x8] sm:$0xf]
        %v414 = vld [vmem:[#allocation11] sm:$0xf]
        %v415 = vld [vmem:[#allocation12] sm:$0xf]
        %v416 = vld [vmem:[#allocation12 + $0x4] sm:$0xf]
        %v417 = vld [vmem:[#allocation12 + $0x8] sm:$0xf]
        %v418 = vld [vmem:[#allocation14] sm:$0xf]
        %s419 = sld [smem:[#allocation2]]
        %v420 = vld [vmem:[%s346] sm:$0xf]
        %422 = vrot.lane.b32.xlu0 %v420, 113
        %v423 = vpop.permute.xlu0 %422
        %425 = vrot.lane.b32.xlu0 %v420, 1
        %v426 = vpop.permute.xlu0 %425
        %vm428 = vcmask 7168
        %v429 = vsel %vm428, %v423, %v426
        %v430 = vsel %vm405, 0.0, %v429
        %431 = vrot.lane.b32.xlu0 %v420, 127
        %v432 = vpop.permute.xlu0 %431
        %434 = vrot.lane.b32.xlu0 %v420, 15
        %v435 = vpop.permute.xlu0 %434
        %vm437 = vcmask 121856
        %v438 = vsel %vm437, %v432, %v435
        %v439 = vsel %vm406, 0.0, %v438
        %vm440 = vcmask 31744
        %v442 = vsel %vm440, %v408, 0
        %vm444 = vcmask 1043456
        %v445 = vsel %vm444, %v420, 0
        %447 = vmatprep.subr.mxu0 0.0
        %448 = vmatpush1.msra.mxu0 %v445
        %449 = vmatprep.subr.mxu0 0.0
        %450 = vmatpush1.msra.mxu0 0.0
        %451 = vmatprep.subr.mxu0 0.0
        %452 = vmatpush1.msra.mxu0 0.0
        %453 = vmatprep.subr.mxu0 0.0
        %454 = vmatpush1.msra.mxu0 0.0
        %455 = vmatprep.subr.mxu0 0.0
        %456 = vmatpush1.msra.mxu0 0.0
        %457 = vmatprep.subr.mxu0 0.0
        %458 = vmatpush1.msra.mxu0 0.0
        %459 = vmatprep.subr.mxu0 0.0
        %460 = vmatpush1.msra.mxu0 0.0
        %461 = vmatprep.subr.mxu0 0.0
        %462 = vmatpush1.msra.mxu0 0.0
        %463 = vmatprep.subr.mxu0 0.0
        %464 = vmatpush1.msra.mxu0 0.0
        %465 = vmatprep.subr.mxu0 0.0
        %466 = vmatpush1.msra.mxu0 0.0
        %467 = vmatprep.subr.mxu0 0.0
        %468 = vmatpush1.msra.mxu0 0.0
        %469 = vmatprep.subr.mxu0 0.0
        %470 = vmatpush1.msra.mxu0 0.0
        %471 = vmatprep.subr.mxu0 0.0
        %472 = vmatpush1.msra.mxu0 0.0
        %473 = vmatprep.subr.mxu0 0.0
        %474 = vmatpush1.msra.mxu0 0.0
        %475 = vmatprep.subr.mxu0 0.0
        %476 = vmatpush1.msra.mxu0 0.0
        %477 = vmatprep.subr.mxu0 0.0
        %478 = vmatpush1.msra.mxu0 0.0
        %479 = vmatprep.subr.mxu0 0.0
        %480 = vmatpush1.msra.mxu0 0.0
        %481 = vmatprep.subr.mxu0 0.0
        %482 = vmatpush1.msra.mxu0 0.0
        %483 = vmatprep.subr.mxu0 0.0
        %484 = vmatpush1.msra.mxu0 0.0
        %485 = vmatprep.subr.mxu0 0.0
        %486 = vmatpush1.msra.mxu0 0.0
        %487 = vmatprep.subr.mxu0 0.0
        %488 = vmatpush1.msra.mxu0 0.0
        %489 = vmatprep.subr.mxu0 0.0
        %490 = vmatpush1.msra.mxu0 0.0
        %491 = vmatprep.subr.mxu0 0.0
        %492 = vmatpush1.msra.mxu0 0.0
        %493 = vmatprep.subr.mxu0 0.0
        %494 = vmatpush1.msra.mxu0 0.0
        %495 = vmatprep.subr.mxu0 0.0
        %496 = vmatpush1.msra.mxu0 0.0
        %497 = vmatprep.subr.mxu0 0.0
        %498 = vmatpush1.msra.mxu0 0.0
        %499 = vmatprep.subr.mxu0 0.0
        %500 = vmatpush1.msra.mxu0 0.0
        %501 = vmatprep.subr.mxu0 0.0
        %502 = vmatpush1.msra.mxu0 0.0
        %503 = vmatprep.subr.mxu0 0.0
        %504 = vmatpush1.msra.mxu0 0.0
        %505 = vmatprep.subr.mxu0 0.0
        %506 = vmatpush1.msra.mxu0 0.0
        %507 = vmatprep.subr.mxu0 0.0
        %508 = vmatpush1.msra.mxu0 0.0
        %509 = vmatprep.subr.mxu0 0.0
        %510 = vmatpush1.msra.mxu0 0.0
        %511 = vmatprep.mubr.f32.mxu0 0.0
        %512 = vmatmul.mubr.f32.gmra.mrb[0].mxu0 %v442
        %v513 = vpop.f32.mrb[0].mxu0
        %v514 = vadd.f32 0.0, %v513
        %v515 = vpop.f32.mrb[0].mxu0
        %516 = vdwg.mxu0
        %v518 = vsel %vm440, %v407, 0
        %v521 = vsel %vm444, %v430, 0
        %523 = vmatprep.subr.mxu0 0.0
        %524 = vmatpush1.msra.mxu0 %v521
        %525 = vmatprep.subr.mxu0 0.0
        %526 = vmatpush1.msra.mxu0 0.0
        %527 = vmatprep.subr.mxu0 0.0
        %528 = vmatpush1.msra.mxu0 0.0
        %529 = vmatprep.subr.mxu0 0.0
        %530 = vmatpush1.msra.mxu0 0.0
        %531 = vmatprep.subr.mxu0 0.0
        %532 = vmatpush1.msra.mxu0 0.0
        %533 = vmatprep.subr.mxu0 0.0
        %534 = vmatpush1.msra.mxu0 0.0
        %535 = vmatprep.subr.mxu0 0.0
        %536 = vmatpush1.msra.mxu0 0.0
        %537 = vmatprep.subr.mxu0 0.0
        %538 = vmatpush1.msra.mxu0 0.0
        %539 = vmatprep.subr.mxu0 0.0
        %540 = vmatpush1.msra.mxu0 0.0
        %541 = vmatprep.subr.mxu0 0.0
        %542 = vmatpush1.msra.mxu0 0.0
        %543 = vmatprep.subr.mxu0 0.0
        %544 = vmatpush1.msra.mxu0 0.0
        %545 = vmatprep.subr.mxu0 0.0
        %546 = vmatpush1.msra.mxu0 0.0
        %547 = vmatprep.subr.mxu0 0.0
        %548 = vmatpush1.msra.mxu0 0.0
        %549 = vmatprep.subr.mxu0 0.0
        %550 = vmatpush1.msra.mxu0 0.0
        %551 = vmatprep.subr.mxu0 0.0
        %552 = vmatpush1.msra.mxu0 0.0
        %553 = vmatprep.subr.mxu0 0.0
        %554 = vmatpush1.msra.mxu0 0.0
        %555 = vmatprep.subr.mxu0 0.0
        %556 = vmatpush1.msra.mxu0 0.0
        %557 = vmatprep.subr.mxu0 0.0
        %558 = vmatpush1.msra.mxu0 0.0
        %559 = vmatprep.subr.mxu0 0.0
        %560 = vmatpush1.msra.mxu0 0.0
        %561 = vmatprep.subr.mxu0 0.0
        %562 = vmatpush1.msra.mxu0 0.0
        %563 = vmatprep.subr.mxu0 0.0
        %564 = vmatpush1.msra.mxu0 0.0
        %565 = vmatprep.subr.mxu0 0.0
        %566 = vmatpush1.msra.mxu0 0.0
        %567 = vmatprep.subr.mxu0 0.0
        %568 = vmatpush1.msra.mxu0 0.0
        %569 = vmatprep.subr.mxu0 0.0
        %570 = vmatpush1.msra.mxu0 0.0
        %571 = vmatprep.subr.mxu0 0.0
        %572 = vmatpush1.msra.mxu0 0.0
        %573 = vmatprep.subr.mxu0 0.0
        %574 = vmatpush1.msra.mxu0 0.0
        %575 = vmatprep.subr.mxu0 0.0
        %576 = vmatpush1.msra.mxu0 0.0
        %577 = vmatprep.subr.mxu0 0.0
        %578 = vmatpush1.msra.mxu0 0.0
        %579 = vmatprep.subr.mxu0 0.0
        %580 = vmatpush1.msra.mxu0 0.0
        %581 = vmatprep.subr.mxu0 0.0
        %582 = vmatpush1.msra.mxu0 0.0
        %583 = vmatprep.subr.mxu0 0.0
        %584 = vmatpush1.msra.mxu0 0.0
        %585 = vmatprep.subr.mxu0 0.0
        %586 = vmatpush1.msra.mxu0 0.0
        %587 = vmatprep.mubr.f32.mxu0 0.0
        %588 = vmatmul.mubr.f32.gmra.mrb[0].mxu0 %v518
        %v589 = vpop.f32.mrb[0].mxu0
        %v590 = vadd.f32 %v514, %v589
        %v591 = vpop.f32.mrb[0].mxu0
        %592 = vdwg.mxu0
        %v594 = vsel %vm440, %v409, 0
        %v597 = vsel %vm444, %v439, 0
        %599 = vmatprep.subr.mxu0 0.0
        %600 = vmatpush1.msra.mxu0 %v597
        %601 = vmatprep.subr.mxu0 0.0
        %602 = vmatpush1.msra.mxu0 0.0
        %603 = vmatprep.subr.mxu0 0.0
        %604 = vmatpush1.msra.mxu0 0.0
        %605 = vmatprep.subr.mxu0 0.0
        %606 = vmatpush1.msra.mxu0 0.0
        %607 = vmatprep.subr.mxu0 0.0
        %608 = vmatpush1.msra.mxu0 0.0
        %609 = vmatprep.subr.mxu0 0.0
        %610 = vmatpush1.msra.mxu0 0.0
        %611 = vmatprep.subr.mxu0 0.0
        %612 = vmatpush1.msra.mxu0 0.0
        %613 = vmatprep.subr.mxu0 0.0
        %614 = vmatpush1.msra.mxu0 0.0
        %615 = vmatprep.subr.mxu0 0.0
        %616 = vmatpush1.msra.mxu0 0.0
        %617 = vmatprep.subr.mxu0 0.0
        %618 = vmatpush1.msra.mxu0 0.0
        %619 = vmatprep.subr.mxu0 0.0
        %620 = vmatpush1.msra.mxu0 0.0
        %621 = vmatprep.subr.mxu0 0.0
        %622 = vmatpush1.msra.mxu0 0.0
        %623 = vmatprep.subr.mxu0 0.0
        %624 = vmatpush1.msra.mxu0 0.0
        %625 = vmatprep.subr.mxu0 0.0
        %626 = vmatpush1.msra.mxu0 0.0
        %627 = vmatprep.subr.mxu0 0.0
        %628 = vmatpush1.msra.mxu0 0.0
        %629 = vmatprep.subr.mxu0 0.0
        %630 = vmatpush1.msra.mxu0 0.0
        %631 = vmatprep.subr.mxu0 0.0
        %632 = vmatpush1.msra.mxu0 0.0
        %633 = vmatprep.subr.mxu0 0.0
        %634 = vmatpush1.msra.mxu0 0.0
        %635 = vmatprep.subr.mxu0 0.0
        %636 = vmatpush1.msra.mxu0 0.0
        %637 = vmatprep.subr.mxu0 0.0
        %638 = vmatpush1.msra.mxu0 0.0
        %639 = vmatprep.subr.mxu0 0.0
        %640 = vmatpush1.msra.mxu0 0.0
        %641 = vmatprep.subr.mxu0 0.0
        %642 = vmatpush1.msra.mxu0 0.0
        %643 = vmatprep.subr.mxu0 0.0
        %644 = vmatpush1.msra.mxu0 0.0
        %645 = vmatprep.subr.mxu0 0.0
        %646 = vmatpush1.msra.mxu0 0.0
        %647 = vmatprep.subr.mxu0 0.0
        %648 = vmatpush1.msra.mxu0 0.0
        %649 = vmatprep.subr.mxu0 0.0
        %650 = vmatpush1.msra.mxu0 0.0
        %651 = vmatprep.subr.mxu0 0.0
        %652 = vmatpush1.msra.mxu0 0.0
        %653 = vmatprep.subr.mxu0 0.0
        %654 = vmatpush1.msra.mxu0 0.0
        %655 = vmatprep.subr.mxu0 0.0
        %656 = vmatpush1.msra.mxu0 0.0
        %657 = vmatprep.subr.mxu0 0.0
        %658 = vmatpush1.msra.mxu0 0.0
        %659 = vmatprep.subr.mxu0 0.0
        %660 = vmatpush1.msra.mxu0 0.0
        %661 = vmatprep.subr.mxu0 0.0
        %662 = vmatpush1.msra.mxu0 0.0
        %663 = vmatprep.mubr.f32.mxu0 0.0
        %664 = vmatmul.mubr.f32.gmra.mrb[0].mxu0 %v594
        %v665 = vpop.f32.mrb[0].mxu0
        %v666 = vadd.f32 0.0, %v665
        %v667 = vpop.f32.mrb[0].mxu0
        %668 = vdwg.mxu0
        %v669 = vadd.f32 %v590, %v666
        %671 = vset.pattern.permute.xlu0 0
        %672 = vperm.xlu0 %671, %v410
        %v673 = vpop.permute.xlu0 %672
        %v675 = vadd.f32 %v669, %v673
        %677 = vrot.lane.b32.xlu0 %v675, 113
        %v678 = vpop.permute.xlu0 %677
        %680 = vrot.lane.b32.xlu0 %v675, 1
        %v681 = vpop.permute.xlu0 %680
        %v683 = vsel %vm428, %v678, %v681
        %v684 = vsel %vm405, 0.0, %v683
        %685 = vrot.lane.b32.xlu0 %v675, 127
        %v686 = vpop.permute.xlu0 %685
        %688 = vrot.lane.b32.xlu0 %v675, 15
        %v689 = vpop.permute.xlu0 %688
        %v691 = vsel %vm437, %v686, %v689
        %v692 = vsel %vm406, 0.0, %v691
        %v694 = vsel %vm440, %v412, 0
        %v696 = vsel %vm444, %v675, 0
        %698 = vmatprep.subr.mxu0 0.0
        %699 = vmatpush1.msra.mxu0 %v696
        %700 = vmatprep.subr.mxu0 0.0
        %701 = vmatpush1.msra.mxu0 0.0
        %702 = vmatprep.subr.mxu0 0.0
        %703 = vmatpush1.msra.mxu0 0.0
        %704 = vmatprep.subr.mxu0 0.0
        %705 = vmatpush1.msra.mxu0 0.0
        %706 = vmatprep.subr.mxu0 0.0
        %707 = vmatpush1.msra.mxu0 0.0
        %708 = vmatprep.subr.mxu0 0.0
        %709 = vmatpush1.msra.mxu0 0.0
        %710 = vmatprep.subr.mxu0 0.0
        %711 = vmatpush1.msra.mxu0 0.0
        %712 = vmatprep.subr.mxu0 0.0
        %713 = vmatpush1.msra.mxu0 0.0
        %714 = vmatprep.subr.mxu0 0.0
        %715 = vmatpush1.msra.mxu0 0.0
        %716 = vmatprep.subr.mxu0 0.0
        %717 = vmatpush1.msra.mxu0 0.0
        %718 = vmatprep.subr.mxu0 0.0
        %719 = vmatpush1.msra.mxu0 0.0
        %720 = vmatprep.subr.mxu0 0.0
        %721 = vmatpush1.msra.mxu0 0.0
        %722 = vmatprep.subr.mxu0 0.0
        %723 = vmatpush1.msra.mxu0 0.0
        %724 = vmatprep.subr.mxu0 0.0
        %725 = vmatpush1.msra.mxu0 0.0
        %726 = vmatprep.subr.mxu0 0.0
        %727 = vmatpush1.msra.mxu0 0.0
        %728 = vmatprep.subr.mxu0 0.0
        %729 = vmatpush1.msra.mxu0 0.0
        %730 = vmatprep.subr.mxu0 0.0
        %731 = vmatpush1.msra.mxu0 0.0
        %732 = vmatprep.subr.mxu0 0.0
        %733 = vmatpush1.msra.mxu0 0.0
        %734 = vmatprep.subr.mxu0 0.0
        %735 = vmatpush1.msra.mxu0 0.0
        %736 = vmatprep.subr.mxu0 0.0
        %737 = vmatpush1.msra.mxu0 0.0
        %738 = vmatprep.subr.mxu0 0.0
        %739 = vmatpush1.msra.mxu0 0.0
        %740 = vmatprep.subr.mxu0 0.0
        %741 = vmatpush1.msra.mxu0 0.0
        %742 = vmatprep.subr.mxu0 0.0
        %743 = vmatpush1.msra.mxu0 0.0
        %744 = vmatprep.subr.mxu0 0.0
        %745 = vmatpush1.msra.mxu0 0.0
        %746 = vmatprep.subr.mxu0 0.0
        %747 = vmatpush1.msra.mxu0 0.0
        %748 = vmatprep.subr.mxu0 0.0
        %749 = vmatpush1.msra.mxu0 0.0
        %750 = vmatprep.subr.mxu0 0.0
        %751 = vmatpush1.msra.mxu0 0.0
        %752 = vmatprep.subr.mxu0 0.0
        %753 = vmatpush1.msra.mxu0 0.0
        %754 = vmatprep.subr.mxu0 0.0
        %755 = vmatpush1.msra.mxu0 0.0
        %756 = vmatprep.subr.mxu0 0.0
        %757 = vmatpush1.msra.mxu0 0.0
        %758 = vmatprep.subr.mxu0 0.0
        %759 = vmatpush1.msra.mxu0 0.0
        %760 = vmatprep.subr.mxu0 0.0
        %761 = vmatpush1.msra.mxu0 0.0
        %762 = vmatprep.mubr.f32.mxu0 0.0
        %763 = vmatmul.mubr.f32.gmra.mrb[0].mxu0 %v694
        %v764 = vpop.f32.mrb[0].mxu0
        %v765 = vadd.f32 0.0, %v764
        %v766 = vpop.f32.mrb[0].mxu0
        %767 = vdwg.mxu0
        %v769 = vsel %vm440, %v411, 0
        %v772 = vsel %vm444, %v684, 0
        %774 = vmatprep.subr.mxu0 0.0
        %775 = vmatpush1.msra.mxu0 %v772
        %776 = vmatprep.subr.mxu0 0.0
        %777 = vmatpush1.msra.mxu0 0.0
        %778 = vmatprep.subr.mxu0 0.0
        %779 = vmatpush1.msra.mxu0 0.0
        %780 = vmatprep.subr.mxu0 0.0
        %781 = vmatpush1.msra.mxu0 0.0
        %782 = vmatprep.subr.mxu0 0.0
        %783 = vmatpush1.msra.mxu0 0.0
        %784 = vmatprep.subr.mxu0 0.0
        %785 = vmatpush1.msra.mxu0 0.0
        %786 = vmatprep.subr.mxu0 0.0
        %787 = vmatpush1.msra.mxu0 0.0
        %788 = vmatprep.subr.mxu0 0.0
        %789 = vmatpush1.msra.mxu0 0.0
        %790 = vmatprep.subr.mxu0 0.0
        %791 = vmatpush1.msra.mxu0 0.0
        %792 = vmatprep.subr.mxu0 0.0
        %793 = vmatpush1.msra.mxu0 0.0
        %794 = vmatprep.subr.mxu0 0.0
        %795 = vmatpush1.msra.mxu0 0.0
        %796 = vmatprep.subr.mxu0 0.0
        %797 = vmatpush1.msra.mxu0 0.0
        %798 = vmatprep.subr.mxu0 0.0
        %799 = vmatpush1.msra.mxu0 0.0
        %800 = vmatprep.subr.mxu0 0.0
        %801 = vmatpush1.msra.mxu0 0.0
        %802 = vmatprep.subr.mxu0 0.0
        %803 = vmatpush1.msra.mxu0 0.0
        %804 = vmatprep.subr.mxu0 0.0
        %805 = vmatpush1.msra.mxu0 0.0
        %806 = vmatprep.subr.mxu0 0.0
        %807 = vmatpush1.msra.mxu0 0.0
        %808 = vmatprep.subr.mxu0 0.0
        %809 = vmatpush1.msra.mxu0 0.0
        %810 = vmatprep.subr.mxu0 0.0
        %811 = vmatpush1.msra.mxu0 0.0
        %812 = vmatprep.subr.mxu0 0.0
        %813 = vmatpush1.msra.mxu0 0.0
        %814 = vmatprep.subr.mxu0 0.0
        %815 = vmatpush1.msra.mxu0 0.0
        %816 = vmatprep.subr.mxu0 0.0
        %817 = vmatpush1.msra.mxu0 0.0
        %818 = vmatprep.subr.mxu0 0.0
        %819 = vmatpush1.msra.mxu0 0.0
        %820 = vmatprep.subr.mxu0 0.0
        %821 = vmatpush1.msra.mxu0 0.0
        %822 = vmatprep.subr.mxu0 0.0
        %823 = vmatpush1.msra.mxu0 0.0
        %824 = vmatprep.subr.mxu0 0.0
        %825 = vmatpush1.msra.mxu0 0.0
        %826 = vmatprep.subr.mxu0 0.0
        %827 = vmatpush1.msra.mxu0 0.0
        %828 = vmatprep.subr.mxu0 0.0
        %829 = vmatpush1.msra.mxu0 0.0
        %830 = vmatprep.subr.mxu0 0.0
        %831 = vmatpush1.msra.mxu0 0.0
        %832 = vmatprep.subr.mxu0 0.0
        %833 = vmatpush1.msra.mxu0 0.0
        %834 = vmatprep.subr.mxu0 0.0
        %835 = vmatpush1.msra.mxu0 0.0
        %836 = vmatprep.subr.mxu0 0.0
        %837 = vmatpush1.msra.mxu0 0.0
        %838 = vmatprep.mubr.f32.mxu0 0.0
        %839 = vmatmul.mubr.f32.gmra.mrb[0].mxu0 %v769
        %v840 = vpop.f32.mrb[0].mxu0
        %v841 = vadd.f32 %v765, %v840
        %v842 = vpop.f32.mrb[0].mxu0
        %843 = vdwg.mxu0
        %v845 = vsel %vm440, %v413, 0
        %v848 = vsel %vm444, %v692, 0
        %850 = vmatprep.subr.mxu0 0.0
        %851 = vmatpush1.msra.mxu0 %v848
        %852 = vmatprep.subr.mxu0 0.0
        %853 = vmatpush1.msra.mxu0 0.0
        %854 = vmatprep.subr.mxu0 0.0
        %855 = vmatpush1.msra.mxu0 0.0
        %856 = vmatprep.subr.mxu0 0.0
        %857 = vmatpush1.msra.mxu0 0.0
        %858 = vmatprep.subr.mxu0 0.0
        %859 = vmatpush1.msra.mxu0 0.0
        %860 = vmatprep.subr.mxu0 0.0
        %861 = vmatpush1.msra.mxu0 0.0
        %862 = vmatprep.subr.mxu0 0.0
        %863 = vmatpush1.msra.mxu0 0.0
        %864 = vmatprep.subr.mxu0 0.0
        %865 = vmatpush1.msra.mxu0 0.0
        %866 = vmatprep.subr.mxu0 0.0
        %867 = vmatpush1.msra.mxu0 0.0
        %868 = vmatprep.subr.mxu0 0.0
        %869 = vmatpush1.msra.mxu0 0.0
        %870 = vmatprep.subr.mxu0 0.0
        %871 = vmatpush1.msra.mxu0 0.0
        %872 = vmatprep.subr.mxu0 0.0
        %873 = vmatpush1.msra.mxu0 0.0
        %874 = vmatprep.subr.mxu0 0.0
        %875 = vmatpush1.msra.mxu0 0.0
        %876 = vmatprep.subr.mxu0 0.0
        %877 = vmatpush1.msra.mxu0 0.0
        %878 = vmatprep.subr.mxu0 0.0
        %879 = vmatpush1.msra.mxu0 0.0
        %880 = vmatprep.subr.mxu0 0.0
        %881 = vmatpush1.msra.mxu0 0.0
        %882 = vmatprep.subr.mxu0 0.0
        %883 = vmatpush1.msra.mxu0 0.0
        %884 = vmatprep.subr.mxu0 0.0
        %885 = vmatpush1.msra.mxu0 0.0
        %886 = vmatprep.subr.mxu0 0.0
        %887 = vmatpush1.msra.mxu0 0.0
        %888 = vmatprep.subr.mxu0 0.0
        %889 = vmatpush1.msra.mxu0 0.0
        %890 = vmatprep.subr.mxu0 0.0
        %891 = vmatpush1.msra.mxu0 0.0
        %892 = vmatprep.subr.mxu0 0.0
        %893 = vmatpush1.msra.mxu0 0.0
        %894 = vmatprep.subr.mxu0 0.0
        %895 = vmatpush1.msra.mxu0 0.0
        %896 = vmatprep.subr.mxu0 0.0
        %897 = vmatpush1.msra.mxu0 0.0
        %898 = vmatprep.subr.mxu0 0.0
        %899 = vmatpush1.msra.mxu0 0.0
        %900 = vmatprep.subr.mxu0 0.0
        %901 = vmatpush1.msra.mxu0 0.0
        %902 = vmatprep.subr.mxu0 0.0
        %903 = vmatpush1.msra.mxu0 0.0
        %904 = vmatprep.subr.mxu0 0.0
        %905 = vmatpush1.msra.mxu0 0.0
        %906 = vmatprep.subr.mxu0 0.0
        %907 = vmatpush1.msra.mxu0 0.0
        %908 = vmatprep.subr.mxu0 0.0
        %909 = vmatpush1.msra.mxu0 0.0
        %910 = vmatprep.subr.mxu0 0.0
        %911 = vmatpush1.msra.mxu0 0.0
        %912 = vmatprep.subr.mxu0 0.0
        %913 = vmatpush1.msra.mxu0 0.0
        %914 = vmatprep.mubr.f32.mxu0 0.0
        %915 = vmatmul.mubr.f32.gmra.mrb[0].mxu0 %v845
        %v916 = vpop.f32.mrb[0].mxu0
        %v917 = vadd.f32 0.0, %v916
        %v918 = vpop.f32.mrb[0].mxu0
        %919 = vdwg.mxu0
        %v920 = vadd.f32 %v841, %v917
        %922 = vset.pattern.permute.xlu0 0
        %923 = vperm.xlu0 %922, %v414
        %v924 = vpop.permute.xlu0 %923
        %v926 = vadd.f32 %v920, %v924
        %928 = vrot.lane.b32.xlu0 %v926, 113
        %v929 = vpop.permute.xlu0 %928
        %931 = vrot.lane.b32.xlu0 %v926, 1
        %v932 = vpop.permute.xlu0 %931
        %v934 = vsel %vm428, %v929, %v932
        %v935 = vsel %vm405, 0.0, %v934
        %936 = vrot.lane.b32.xlu0 %v926, 127
        %v937 = vpop.permute.xlu0 %936
        %939 = vrot.lane.b32.xlu0 %v926, 15
        %v940 = vpop.permute.xlu0 %939
        %v942 = vsel %vm437, %v937, %v940
        %v943 = vsel %vm406, 0.0, %v942
        %v945 = vsel %vm440, %v416, 0
        %v947 = vsel %vm444, %v926, 0
        %949 = vmatprep.subr.mxu0 0.0
        %950 = vmatpush1.msra.mxu0 %v947
        %951 = vmatprep.subr.mxu0 0.0
        %952 = vmatpush1.msra.mxu0 0.0
        %953 = vmatprep.subr.mxu0 0.0
        %954 = vmatpush1.msra.mxu0 0.0
        %955 = vmatprep.subr.mxu0 0.0
        %956 = vmatpush1.msra.mxu0 0.0
        %957 = vmatprep.subr.mxu0 0.0
        %958 = vmatpush1.msra.mxu0 0.0
        %959 = vmatprep.subr.mxu0 0.0
        %960 = vmatpush1.msra.mxu0 0.0
        %961 = vmatprep.subr.mxu0 0.0
        %962 = vmatpush1.msra.mxu0 0.0
        %963 = vmatprep.subr.mxu0 0.0
        %964 = vmatpush1.msra.mxu0 0.0
        %965 = vmatprep.subr.mxu0 0.0
        %966 = vmatpush1.msra.mxu0 0.0
        %967 = vmatprep.subr.mxu0 0.0
        %968 = vmatpush1.msra.mxu0 0.0
        %969 = vmatprep.subr.mxu0 0.0
        %970 = vmatpush1.msra.mxu0 0.0
        %971 = vmatprep.subr.mxu0 0.0
        %972 = vmatpush1.msra.mxu0 0.0
        %973 = vmatprep.subr.mxu0 0.0
        %974 = vmatpush1.msra.mxu0 0.0
        %975 = vmatprep.subr.mxu0 0.0
        %976 = vmatpush1.msra.mxu0 0.0
        %977 = vmatprep.subr.mxu0 0.0
        %978 = vmatpush1.msra.mxu0 0.0
        %979 = vmatprep.subr.mxu0 0.0
        %980 = vmatpush1.msra.mxu0 0.0
        %981 = vmatprep.subr.mxu0 0.0
        %982 = vmatpush1.msra.mxu0 0.0
        %983 = vmatprep.subr.mxu0 0.0
        %984 = vmatpush1.msra.mxu0 0.0
        %985 = vmatprep.subr.mxu0 0.0
        %986 = vmatpush1.msra.mxu0 0.0
        %987 = vmatprep.subr.mxu0 0.0
        %988 = vmatpush1.msra.mxu0 0.0
        %989 = vmatprep.subr.mxu0 0.0
        %990 = vmatpush1.msra.mxu0 0.0
        %991 = vmatprep.subr.mxu0 0.0
        %992 = vmatpush1.msra.mxu0 0.0
        %993 = vmatprep.subr.mxu0 0.0
        %994 = vmatpush1.msra.mxu0 0.0
        %995 = vmatprep.subr.mxu0 0.0
        %996 = vmatpush1.msra.mxu0 0.0
        %997 = vmatprep.subr.mxu0 0.0
        %998 = vmatpush1.msra.mxu0 0.0
        %999 = vmatprep.subr.mxu0 0.0
        %1000 = vmatpush1.msra.mxu0 0.0
        %1001 = vmatprep.subr.mxu0 0.0
        %1002 = vmatpush1.msra.mxu0 0.0
        %1003 = vmatprep.subr.mxu0 0.0
        %1004 = vmatpush1.msra.mxu0 0.0
        %1005 = vmatprep.subr.mxu0 0.0
        %1006 = vmatpush1.msra.mxu0 0.0
        %1007 = vmatprep.subr.mxu0 0.0
        %1008 = vmatpush1.msra.mxu0 0.0
        %1009 = vmatprep.subr.mxu0 0.0
        %1010 = vmatpush1.msra.mxu0 0.0
        %1011 = vmatprep.subr.mxu0 0.0
        %1012 = vmatpush1.msra.mxu0 0.0
        %1013 = vmatprep.mubr.f32.mxu0 0.0
        %1014 = vmatmul.mubr.f32.gmra.mrb[0].mxu0 %v945
        %v1015 = vpop.f32.mrb[0].mxu0
        %v1016 = vadd.f32 0.0, %v1015
        %v1017 = vpop.f32.mrb[0].mxu0
        %1018 = vdwg.mxu0
        %v1020 = vsel %vm440, %v415, 0
        %v1023 = vsel %vm444, %v935, 0
        %1025 = vmatprep.subr.mxu0 0.0
        %1026 = vmatpush1.msra.mxu0 %v1023
        %1027 = vmatprep.subr.mxu0 0.0
        %1028 = vmatpush1.msra.mxu0 0.0
        %1029 = vmatprep.subr.mxu0 0.0
        %1030 = vmatpush1.msra.mxu0 0.0
        %1031 = vmatprep.subr.mxu0 0.0
        %1032 = vmatpush1.msra.mxu0 0.0
        %1033 = vmatprep.subr.mxu0 0.0
        %1034 = vmatpush1.msra.mxu0 0.0
        %1035 = vmatprep.subr.mxu0 0.0
        %1036 = vmatpush1.msra.mxu0 0.0
        %1037 = vmatprep.subr.mxu0 0.0
        %1038 = vmatpush1.msra.mxu0 0.0
        %1039 = vmatprep.subr.mxu0 0.0
        %1040 = vmatpush1.msra.mxu0 0.0
        %1041 = vmatprep.subr.mxu0 0.0
        %1042 = vmatpush1.msra.mxu0 0.0
        %1043 = vmatprep.subr.mxu0 0.0
        %1044 = vmatpush1.msra.mxu0 0.0
        %1045 = vmatprep.subr.mxu0 0.0
        %1046 = vmatpush1.msra.mxu0 0.0
        %1047 = vmatprep.subr.mxu0 0.0
        %1048 = vmatpush1.msra.mxu0 0.0
        %1049 = vmatprep.subr.mxu0 0.0
        %1050 = vmatpush1.msra.mxu0 0.0
        %1051 = vmatprep.subr.mxu0 0.0
        %1052 = vmatpush1.msra.mxu0 0.0
        %1053 = vmatprep.subr.mxu0 0.0
        %1054 = vmatpush1.msra.mxu0 0.0
        %1055 = vmatprep.subr.mxu0 0.0
        %1056 = vmatpush1.msra.mxu0 0.0
        %1057 = vmatprep.subr.mxu0 0.0
        %1058 = vmatpush1.msra.mxu0 0.0
        %1059 = vmatprep.subr.mxu0 0.0
        %1060 = vmatpush1.msra.mxu0 0.0
        %1061 = vmatprep.subr.mxu0 0.0
        %1062 = vmatpush1.msra.mxu0 0.0
        %1063 = vmatprep.subr.mxu0 0.0
        %1064 = vmatpush1.msra.mxu0 0.0
        %1065 = vmatprep.subr.mxu0 0.0
        %1066 = vmatpush1.msra.mxu0 0.0
        %1067 = vmatprep.subr.mxu0 0.0
        %1068 = vmatpush1.msra.mxu0 0.0
        %1069 = vmatprep.subr.mxu0 0.0
        %1070 = vmatpush1.msra.mxu0 0.0
        %1071 = vmatprep.subr.mxu0 0.0
        %1072 = vmatpush1.msra.mxu0 0.0
        %1073 = vmatprep.subr.mxu0 0.0
        %1074 = vmatpush1.msra.mxu0 0.0
        %1075 = vmatprep.subr.mxu0 0.0
        %1076 = vmatpush1.msra.mxu0 0.0
        %1077 = vmatprep.subr.mxu0 0.0
        %1078 = vmatpush1.msra.mxu0 0.0
        %1079 = vmatprep.subr.mxu0 0.0
        %1080 = vmatpush1.msra.mxu0 0.0
        %1081 = vmatprep.subr.mxu0 0.0
        %1082 = vmatpush1.msra.mxu0 0.0
        %1083 = vmatprep.subr.mxu0 0.0
        %1084 = vmatpush1.msra.mxu0 0.0
        %1085 = vmatprep.subr.mxu0 0.0
        %1086 = vmatpush1.msra.mxu0 0.0
        %1087 = vmatprep.subr.mxu0 0.0
        %1088 = vmatpush1.msra.mxu0 0.0
        %1089 = vmatprep.mubr.f32.mxu0 0.0
        %1090 = vmatmul.mubr.f32.gmra.mrb[0].mxu0 %v1020
        %v1091 = vpop.f32.mrb[0].mxu0
        %v1092 = vadd.f32 %v1016, %v1091
        %v1093 = vpop.f32.mrb[0].mxu0
        %1094 = vdwg.mxu0
        %v1096 = vsel %vm440, %v417, 0
        %v1099 = vsel %vm444, %v943, 0
        %1101 = vmatprep.subr.mxu0 0.0
        %1102 = vmatpush1.msra.mxu0 %v1099
        %1103 = vmatprep.subr.mxu0 0.0
        %1104 = vmatpush1.msra.mxu0 0.0
        %1105 = vmatprep.subr.mxu0 0.0
        %1106 = vmatpush1.msra.mxu0 0.0
        %1107 = vmatprep.subr.mxu0 0.0
        %1108 = vmatpush1.msra.mxu0 0.0
        %1109 = vmatprep.subr.mxu0 0.0
        %1110 = vmatpush1.msra.mxu0 0.0
        %1111 = vmatprep.subr.mxu0 0.0
        %1112 = vmatpush1.msra.mxu0 0.0
        %1113 = vmatprep.subr.mxu0 0.0
        %1114 = vmatpush1.msra.mxu0 0.0
        %1115 = vmatprep.subr.mxu0 0.0
        %1116 = vmatpush1.msra.mxu0 0.0
        %1117 = vmatprep.subr.mxu0 0.0
        %1118 = vmatpush1.msra.mxu0 0.0
        %1119 = vmatprep.subr.mxu0 0.0
        %1120 = vmatpush1.msra.mxu0 0.0
        %1121 = vmatprep.subr.mxu0 0.0
        %1122 = vmatpush1.msra.mxu0 0.0
        %1123 = vmatprep.subr.mxu0 0.0
        %1124 = vmatpush1.msra.mxu0 0.0
        %1125 = vmatprep.subr.mxu0 0.0
        %1126 = vmatpush1.msra.mxu0 0.0
        %1127 = vmatprep.subr.mxu0 0.0
        %1128 = vmatpush1.msra.mxu0 0.0
        %1129 = vmatprep.subr.mxu0 0.0
        %1130 = vmatpush1.msra.mxu0 0.0
        %1131 = vmatprep.subr.mxu0 0.0
        %1132 = vmatpush1.msra.mxu0 0.0
        %1133 = vmatprep.subr.mxu0 0.0
        %1134 = vmatpush1.msra.mxu0 0.0
        %1135 = vmatprep.subr.mxu0 0.0
        %1136 = vmatpush1.msra.mxu0 0.0
        %1137 = vmatprep.subr.mxu0 0.0
        %1138 = vmatpush1.msra.mxu0 0.0
        %1139 = vmatprep.subr.mxu0 0.0
        %1140 = vmatpush1.msra.mxu0 0.0
        %1141 = vmatprep.subr.mxu0 0.0
        %1142 = vmatpush1.msra.mxu0 0.0
        %1143 = vmatprep.subr.mxu0 0.0
        %1144 = vmatpush1.msra.mxu0 0.0
        %1145 = vmatprep.subr.mxu0 0.0
        %1146 = vmatpush1.msra.mxu0 0.0
        %1147 = vmatprep.subr.mxu0 0.0
        %1148 = vmatpush1.msra.mxu0 0.0
        %1149 = vmatprep.subr.mxu0 0.0
        %1150 = vmatpush1.msra.mxu0 0.0
        %1151 = vmatprep.subr.mxu0 0.0
        %1152 = vmatpush1.msra.mxu0 0.0
        %1153 = vmatprep.subr.mxu0 0.0
        %1154 = vmatpush1.msra.mxu0 0.0
        %1155 = vmatprep.subr.mxu0 0.0
        %1156 = vmatpush1.msra.mxu0 0.0
        %1157 = vmatprep.subr.mxu0 0.0
        %1158 = vmatpush1.msra.mxu0 0.0
        %1159 = vmatprep.subr.mxu0 0.0
        %1160 = vmatpush1.msra.mxu0 0.0
        %1161 = vmatprep.subr.mxu0 0.0
        %1162 = vmatpush1.msra.mxu0 0.0
        %1163 = vmatprep.subr.mxu0 0.0
        %1164 = vmatpush1.msra.mxu0 0.0
        %1165 = vmatprep.mubr.f32.mxu0 0.0
        %1166 = vmatmul.mubr.f32.gmra.mrb[0].mxu0 %v1096
        %v1167 = vpop.f32.mrb[0].mxu0
        %v1168 = vadd.f32 0.0, %v1167
        %v1169 = vpop.f32.mrb[0].mxu0
        %1170 = vdwg.mxu0
        %v1171 = vadd.f32 %v1092, %v1168
        %1173 = vset.pattern.permute.xlu0 0
        %1174 = vperm.xlu0 %1173, %v418
        %v1175 = vpop.permute.xlu0 %1174
        %v1177 = vadd.f32 %v1171, %v1175
        %vm1178 = vcmp.ge.f32.partialorder %v1177, 0.0
        %v1179 = vstv %s419
        %v1180 = vmul.f32 %v1179, %v1177
        %v1181 = vsel %vm1178, %v1177, %v1180
        %vm1182 = vcmask 125952
        %1183 = vst.msk [vmem:[%s402] sm:$0xf] %vm1182, %v1181
        %s1184 = sand.u32 %s210, 1
        %s1185 = scalar_lea.sflag [#allocation5], %s1184
        %s1186 = sand.u32 %s210, 1
        %s1187 = smul.addr %s1186, 4
        %s1188 = scalar_lea.vmem [#allocation15], %s1187
        // Predicated region
        $region81: #{tpu_custom_call.1} parent=51 // pred_check
          %p1189 = pneg %p220
        $region82: #{tpu_custom_call.1} parent=51 // pred_check_branch
          %1191 = sbr.rel (%p1189) target = $region84
        $region83: #{tpu_custom_call.1} parent=51 // pred_region
          %s1193 = ssub.s32 64, 64
          %1194 = vsyncadd %s1185, %s1193
          %s1195 = smul.addr %s29, 64
          %s1196 = scalar_lea.hbm %s8, %s1195
          %s1198 = sshll.u32 %s1188, 4
          %s1199 = int_to_ptr.vmem [resolvable:$true] %s1198
          %1201 = dma.vmem_to_hbm [thread:$0]  %s1199, 64, %s1196, %s1185
        $region84: #{tpu_custom_call.1} parent=51 // pred_fallthru
          _
      $region52: #{tpu_custom_call.1} parent=5 // pred_fallthru
        _
      %p1202 = scmp.le.s32.totalorder 2, %s24
      // Predicated region
      $region85: #{tpu_custom_call.1} parent=5 // pred_check
        %p1203 = pneg %p1202
      $region86: #{tpu_custom_call.1} parent=5 // pred_check_branch
        %1205 = sbr.rel (%p1203) target = $region88
      $region87: #{tpu_custom_call.1} parent=5 // pred_region
        %s1206 = ssub.s32 %s24, 2
        // Predicated region
        $region89: #{tpu_custom_call.1} parent=87 // pred_check
          %p1207 = pneg %p226
        $region90: #{tpu_custom_call.1} parent=87 // pred_check_branch
          %1209 = sbr.rel (%p1207) target = $region92
        $region91: #{tpu_custom_call.1} parent=87 // pred_region
          %s1210 = sand.u32 %s211, 1
          %s1211 = scalar_lea.sflag [#allocation5], %s1210
          %s1212 = sand.u32 %s211, 1
          %s1213 = smul.addr %s1212, 4
          %s1214 = scalar_lea.vmem [#allocation15], %s1213
          %1215 = dma.done %s1211, 64
        $region92: #{tpu_custom_call.1} parent=87 // pred_fallthru
          _
      $region88: #{tpu_custom_call.1} parent=5 // pred_fallthru
        _
    $region6: #{tpu_custom_call.1} parent=1 // loop_footer
      %s28 = sadd.s32 1, %s24
    $region7: #{tpu_custom_call.1} parent=1 // loop_footer_branch
      %23 = sbr.rel target = $region3
    $region8: #{tpu_custom_call.1} parent=1 // loop_exit
      _
    %1216 = vsyncpa [#allocation4], 1
    %s1217 = scalar_lea.sflag [#allocation4], 1
    %1218 = vsyncpa %s1217, 1
    %1219 = vsyncpa [#allocation7], 1
    %1220 = vsyncpa [#allocation10], 1
    %1221 = vsyncpa [#allocation13], 1
    %1222 = vsyncpa [#allocation5], 1
    %s1223 = scalar_lea.sflag [#allocation5], 1
    %1224 = vsyncpa %s1223, 1

</llo_original>
